<compile_context>
chip_gen: v5e
topology: v5e:2x2
jax: 0.10.0
libtpu: 0.0.40
codegen_flags: <defaults>
</compile_context>

<pallas_src>
import math

import jax
import jax.numpy as jnp
import numpy as np
from jax.experimental import pallas as pl
from jax.experimental.pallas import tpu as pltpu

SEQ = 8
BATCH = 2
D_MODEL = 32
D_FF = 64
N_LAYERS = 2
N_VOCAB = 50
N_CLASSES = 3
MAX_LEN = 16
LN_EPS = 1e-5          # torch.nn.LayerNorm default
LANE = 128             # lane-dense padded logits width


def _layer_norm(v, w, b):
    mu = jnp.mean(v, axis=-1, keepdims=True)
    var = jnp.mean((v - mu) ** 2, axis=-1, keepdims=True)
    return (v - mu) * jax.lax.rsqrt(var + LN_EPS) * w + b


def transformer_classifier_kernel(xin_ref, pkd_ref, w1_ref, w2_ref,
                                  seqmix_ref, hidmix_ref, gen_ref, out_ref):
    d_model = xin_ref.shape[-1]
    bs = xin_ref.shape[1]                     # B*S flattened token rows (seq-major)
    tail = out_ref.shape[0]                   # aligned tail holding the last tokens
    n_layers = w1_ref.shape[0]
    b1_row = 5 * n_layers + 2                 # first b1 row inside the packed slab

    # --- src_embed: token embedding * sqrt(d_model) + learned positional encoding ---
    x = xin_ref[0] * jnp.float32(math.sqrt(d_model)) + xin_ref[1]      # [B*S, D]

    p1 = seqmix_ref[...]                      # [[Cs⊗I],[Ss⊗I]] : [2*B*S, B*S]
    ch = hidmix_ref[0]                        # [D, D]
    sh = hidmix_ref[1]                        # [D, D]

    for l in range(n_layers):
        base = 5 * l
        # --- FNet token/hidden mixing sublayer (pre-norm + residual) ---
        z = _layer_norm(x, pkd_ref[base + 0][:d_model], pkd_ref[base + 1][:d_model])
        # Re(FFT_seq(FFT_hidden(z))) == Cs @ z @ Ch - Ss @ z @ Sh  (z real)
        ab = jnp.dot(p1, z, preferred_element_type=jnp.float32)       # [2*B*S, D]
        mix = (jnp.dot(ab[:bs], ch, preferred_element_type=jnp.float32)
               - jnp.dot(ab[bs:], sh, preferred_element_type=jnp.float32))
        x = x + mix                           # dropout = identity in eval mode

        # --- FeedForward sublayer (pre-norm + residual), ReLU activation ---
        z = _layer_norm(x, pkd_ref[base + 2][:d_model], pkd_ref[base + 3][:d_model])
        h = jnp.maximum(
            jnp.dot(z, w1_ref[l], preferred_element_type=jnp.float32)
            + pkd_ref[b1_row + l], 0.0)
        x = (x + jnp.dot(h, w2_ref[l], preferred_element_type=jnp.float32)
             + pkd_ref[base + 4][:d_model])

    # --- final encoder LayerNorm + generator, on the aligned tail that holds the last
    #     tokens only (LN is per-row; the module's generator only reads x[-1]) ---
    xt = x[bs - tail:]                                               # [tail, D]
    xt = _layer_norm(xt, pkd_ref[5 * n_layers][:d_model],
                     pkd_ref[5 * n_layers + 1][:d_model])
    gw = gen_ref[:d_model, :]                 # [D, 128]  (zero past n_classes)
    gb = gen_ref[d_model, :]                  # [128]
    out_ref[...] = jnp.dot(xt, gw, preferred_element_type=jnp.float32) + gb


def dft_matrices(n):
    """Real/imag parts of the n-point DFT matrix: F = C - i*S."""
    k = jnp.arange(n, dtype=jnp.float32)
    ang = 2.0 * jnp.pi * jnp.outer(k, k) / n
    return jnp.cos(ang), jnp.sin(ang)


def init_params(key):
    ks = jax.random.split(key, 8)
    p = {}
    p["emb_table"] = jax.random.normal(ks[0], (N_VOCAB, D_MODEL), jnp.float32) * 0.1
    p["pos"] = jax.random.normal(ks[1], (MAX_LEN, D_MODEL), jnp.float32) * 0.02
    p["ln1_w"] = jnp.ones((N_LAYERS, D_MODEL), jnp.float32)
    p["ln1_b"] = jnp.zeros((N_LAYERS, D_MODEL), jnp.float32)
    p["ln2_w"] = jnp.ones((N_LAYERS, D_MODEL), jnp.float32)
    p["ln2_b"] = jnp.zeros((N_LAYERS, D_MODEL), jnp.float32)
    p["w1"] = jax.random.normal(ks[2], (N_LAYERS, D_MODEL, D_FF), jnp.float32) * 0.05
    p["b1"] = jax.random.normal(ks[3], (N_LAYERS, D_FF), jnp.float32) * 0.01
    p["w2"] = jax.random.normal(ks[4], (N_LAYERS, D_FF, D_MODEL), jnp.float32) * 0.05
    p["b2"] = jax.random.normal(ks[5], (N_LAYERS, D_MODEL), jnp.float32) * 0.01
    p["lnf_w"] = jnp.ones((D_MODEL,), jnp.float32)
    p["lnf_b"] = jnp.zeros((D_MODEL,), jnp.float32)
    p["gen_w"] = jax.random.normal(ks[6], (D_MODEL, N_CLASSES), jnp.float32) * 0.05
    p["gen_b"] = jax.random.normal(ks[7], (N_CLASSES,), jnp.float32) * 0.01
    return p


@jax.jit
def transformer_classifier_forward(tokens, params):
    """tokens: [seq, batch] int32 (same convention as the PyTorch module)."""
    seq, batch = tokens.shape
    flat = seq * batch
    # aligned tail of rows containing the last token of every sequence
    tail = min(flat, max(8, ((batch + 7) // 8) * 8))

    # Glue (jit-fused): data-dependent embedding gather, seq-major flattening, constant
    # DFT matrices and parameter packing.
    emb = params["emb_table"][tokens].reshape(flat, D_MODEL)        # row = s*B + b
    pos = jnp.repeat(params["pos"][:seq], batch, axis=0)            # [B*S, D]
    xin = jnp.stack([emb, pos], axis=0)                             # [2, B*S, D]

    cs, ss = dft_matrices(seq)                                      # seq DFT
    ch, sh = dft_matrices(D_MODEL)                                  # hidden DFT
    eye_b = jnp.eye(batch, dtype=jnp.float32)
    seqmix = jnp.concatenate([jnp.kron(cs, eye_b),
                              jnp.kron(ss, eye_b)], axis=0)         # [2*B*S, B*S]
    hidmix = jnp.stack([ch, sh], axis=0)                            # [2, D, D]

    rows = []
    for l in range(N_LAYERS):
        rows += [params["ln1_w"][l], params["ln1_b"][l],
                 params["ln2_w"][l], params["ln2_b"][l], params["b2"][l]]
    rows += [params["lnf_w"], params["lnf_b"]]
    pv = jnp.stack(rows, axis=0)                                    # [5*L+2, D]
    pv = jnp.pad(pv, ((0, 0), (0, D_FF - D_MODEL)))                 # widen to D_FF lanes
    pkd = jnp.concatenate([pv, params["b1"]], axis=0)               # [5*L+2+L, D_FF]
    pkd = jnp.pad(pkd, ((0, (-pkd.shape[0]) % 8), (0, 0)))          # sublane-pad

    gen = jnp.zeros((D_MODEL + 1, LANE), jnp.float32)
    gen = gen.at[:D_MODEL, :N_CLASSES].set(params["gen_w"])
    gen = gen.at[D_MODEL, :N_CLASSES].set(params["gen_b"])          # [D+1, 128]

    args = (xin, pkd, params["w1"], params["w2"], seqmix, hidmix, gen)

    out = pl.pallas_call(
        transformer_classifier_kernel,
        out_shape=jax.ShapeDtypeStruct((tail, LANE), jnp.float32),
        in_specs=[pl.BlockSpec(memory_space=pltpu.MemorySpace.VMEM)] * len(args),
        out_specs=pl.BlockSpec(memory_space=pltpu.MemorySpace.VMEM),
    )(*args)

    # last token of each sequence = last `batch` rows of the seq-major slab
    logits = out[tail - batch:, :N_CLASSES]                         # [batch, n_classes]
    return logits, None                       # matches module's `return (x, None)`


def reference_forward(tokens, params):
    """Pure-JAX reference mirroring the PyTorch forward (seq-major)."""
    seq = tokens.shape[0]
    x = (params["emb_table"][tokens] * math.sqrt(D_MODEL)
         + params["pos"][:seq][:, None, :])   # [S, B, D]

    def ln(v, w, b):
        mu = v.mean(-1, keepdims=True)
        var = ((v - mu) ** 2).mean(-1, keepdims=True)
        return (v - mu) / jnp.sqrt(var + LN_EPS) * w + b

    for l in range(N_LAYERS):
        z = ln(x, params["ln1_w"][l], params["ln1_b"][l])
        mix = jnp.real(jnp.fft.fft(jnp.fft.fft(z, axis=2), axis=0))
        x = x + mix
        z = ln(x, params["ln2_w"][l], params["ln2_b"][l])
        h = jax.nn.relu(z @ params["w1"][l] + params["b1"][l])
        x = x + h @ params["w2"][l] + params["b2"][l]
    x = ln(x, params["lnf_w"], params["lnf_b"])
    return x[-1] @ params["gen_w"] + params["gen_b"]


if __name__ == "__main__":
    key = jax.random.PRNGKey(0)
    pkey, tkey = jax.random.split(key)
    params = init_params(pkey)
    tokens = jax.random.randint(tkey, (SEQ, BATCH), 0, N_VOCAB, dtype=jnp.int32)

    logits, extra = transformer_classifier_forward(tokens, params)
    logits = jax.block_until_ready(logits)
    assert logits.shape == (BATCH, N_CLASSES)
    assert extra is None

    ref = reference_forward(tokens, params)
    np.testing.assert_allclose(np.asarray(logits), np.asarray(ref), rtol=2e-3, atol=2e-3)
    print("KERNEL_OK")
</pallas_src>

<mosaic_0001>
module attributes {stable_mosaic.version = 11 : i64} {
  func.func @transformer_classifier_kernel(%arg0: memref<2x16x32xf32, #tpu.memory_space<vmem>>, %arg1: memref<16x64xf32, #tpu.memory_space<vmem>>, %arg2: memref<2x32x64xf32, #tpu.memory_space<vmem>>, %arg3: memref<2x64x32xf32, #tpu.memory_space<vmem>>, %arg4: memref<32x16xf32, #tpu.memory_space<vmem>>, %arg5: memref<2x32x32xf32, #tpu.memory_space<vmem>>, %arg6: memref<33x128xf32, #tpu.memory_space<vmem>>, %arg7: memref<8x128xf32, #tpu.memory_space<vmem>>) attributes {dimension_semantics = [], scalar_prefetch = 0 : i64, scratch_operands = 0 : i64, tpu.core_type = #tpu.core_type<tc>} {
    %c0 = arith.constant 0 : index
    %c0_0 = arith.constant 0 : index
    %c0_1 = arith.constant 0 : index
    %0 = vector.load %arg0[%c0, %c0_0, %c0_1] : memref<2x16x32xf32, #tpu.memory_space<vmem>>, vector<1x16x32xf32>
    %1 = vector.shape_cast %0 : vector<1x16x32xf32> to vector<16x32xf32>
    %cst = arith.constant 5.65685415 : f32
    %2 = vector.broadcast %cst : f32 to vector<16x32xf32>
    %3 = arith.mulf %1, %2 : vector<16x32xf32>
    %c1 = arith.constant 1 : index
    %c0_2 = arith.constant 0 : index
    %c0_3 = arith.constant 0 : index
    %4 = vector.load %arg0[%c1, %c0_2, %c0_3] : memref<2x16x32xf32, #tpu.memory_space<vmem>>, vector<1x16x32xf32>
    %5 = vector.shape_cast %4 : vector<1x16x32xf32> to vector<16x32xf32>
    %6 = arith.addf %3, %5 : vector<16x32xf32>
    %c0_4 = arith.constant 0 : index
    %c0_5 = arith.constant 0 : index
    %7 = vector.load %arg4[%c0_4, %c0_5] : memref<32x16xf32, #tpu.memory_space<vmem>>, vector<32x16xf32>
    %c0_6 = arith.constant 0 : index
    %c0_7 = arith.constant 0 : index
    %c0_8 = arith.constant 0 : index
    %8 = vector.load %arg5[%c0_6, %c0_7, %c0_8] : memref<2x32x32xf32, #tpu.memory_space<vmem>>, vector<1x32x32xf32>
    %9 = vector.shape_cast %8 : vector<1x32x32xf32> to vector<32x32xf32>
    %c1_9 = arith.constant 1 : index
    %c0_10 = arith.constant 0 : index
    %c0_11 = arith.constant 0 : index
    %10 = vector.load %arg5[%c1_9, %c0_10, %c0_11] : memref<2x32x32xf32, #tpu.memory_space<vmem>>, vector<1x32x32xf32>
    %11 = vector.shape_cast %10 : vector<1x32x32xf32> to vector<32x32xf32>
    %c0_12 = arith.constant 0 : index
    %c0_13 = arith.constant 0 : index
    %12 = vector.load %arg1[%c0_12, %c0_13] : memref<16x64xf32, #tpu.memory_space<vmem>>, vector<1x64xf32>
    %13 = vector.shape_cast %12 : vector<1x64xf32> to vector<64xf32>
    %14 = vector.extract_strided_slice %13 {offsets = [0], sizes = [32], strides = [1]} : vector<64xf32> to vector<32xf32>
    %c1_14 = arith.constant 1 : index
    %c0_15 = arith.constant 0 : index
    %15 = vector.load %arg1[%c1_14, %c0_15] : memref<16x64xf32, #tpu.memory_space<vmem>>, vector<1x64xf32>
    %16 = vector.shape_cast %15 : vector<1x64xf32> to vector<64xf32>
    %17 = vector.extract_strided_slice %16 {offsets = [0], sizes = [32], strides = [1]} : vector<64xf32> to vector<32xf32>
    %cst_16 = arith.constant dense<0.000000e+00> : vector<16xf32>
    %18 = vector.multi_reduction <add>, %6, %cst_16 [1] : vector<16x32xf32> to vector<16xf32>
    %19 = vector.shape_cast %18 : vector<16xf32> to vector<16x1xf32>
    %cst_17 = arith.constant 3.200000e+01 : f32
    %20 = vector.broadcast %cst_17 : f32 to vector<16x1xf32>
    %21 = arith.divf %19, %20 : vector<16x1xf32>
    %22 = vector.broadcast %21 : vector<16x1xf32> to vector<16x32xf32>
    %23 = arith.subf %6, %22 : vector<16x32xf32>
    %24 = arith.mulf %23, %23 : vector<16x32xf32>
    %cst_18 = arith.constant dense<0.000000e+00> : vector<16xf32>
    %25 = vector.multi_reduction <add>, %24, %cst_18 [1] : vector<16x32xf32> to vector<16xf32>
    %26 = vector.shape_cast %25 : vector<16xf32> to vector<16x1xf32>
    %cst_19 = arith.constant 3.200000e+01 : f32
    %27 = vector.broadcast %cst_19 : f32 to vector<16x1xf32>
    %28 = arith.divf %26, %27 : vector<16x1xf32>
    %29 = vector.broadcast %21 : vector<16x1xf32> to vector<16x32xf32>
    %30 = arith.subf %6, %29 : vector<16x32xf32>
    %cst_20 = arith.constant 9.99999974E-6 : f32
    %31 = vector.broadcast %cst_20 : f32 to vector<16x1xf32>
    %32 = arith.addf %28, %31 : vector<16x1xf32>
    %33 = math.rsqrt %32 : vector<16x1xf32>
    %34 = vector.broadcast %33 : vector<16x1xf32> to vector<16x32xf32>
    %35 = arith.mulf %30, %34 : vector<16x32xf32>
    %36 = vector.shape_cast %14 : vector<32xf32> to vector<1x32xf32>
    %37 = vector.broadcast %36 : vector<1x32xf32> to vector<16x32xf32>
    %38 = arith.mulf %35, %37 : vector<16x32xf32>
    %39 = vector.shape_cast %17 : vector<32xf32> to vector<1x32xf32>
    %40 = vector.broadcast %39 : vector<1x32xf32> to vector<16x32xf32>
    %41 = arith.addf %38, %40 : vector<16x32xf32>
    %cst_21 = arith.constant dense<0.000000e+00> : vector<32x32xf32>
    %42 = tpu.matmul %7, %41, %cst_21 {dimension_numbers = #tpu.dot_dimension_numbers<[1], [0], [0], [1], [0, 0, 1, 1], [], []>} : vector<32x16xf32>, vector<16x32xf32>, vector<32x32xf32> -> vector<32x32xf32>
    %43 = vector.extract_strided_slice %42 {offsets = [0, 0], sizes = [16, 32], strides = [1, 1]} : vector<32x32xf32> to vector<16x32xf32>
    %cst_22 = arith.constant dense<0.000000e+00> : vector<16x32xf32>
    %44 = tpu.matmul %43, %9, %cst_22 {dimension_numbers = #tpu.dot_dimension_numbers<[1], [0], [0], [1], [0, 0, 1, 1], [], []>} : vector<16x32xf32>, vector<32x32xf32>, vector<16x32xf32> -> vector<16x32xf32>
    %45 = vector.extract_strided_slice %42 {offsets = [16, 0], sizes = [16, 32], strides = [1, 1]} : vector<32x32xf32> to vector<16x32xf32>
    %cst_23 = arith.constant dense<0.000000e+00> : vector<16x32xf32>
    %46 = tpu.matmul %45, %11, %cst_23 {dimension_numbers = #tpu.dot_dimension_numbers<[1], [0], [0], [1], [0, 0, 1, 1], [], []>} : vector<16x32xf32>, vector<32x32xf32>, vector<16x32xf32> -> vector<16x32xf32>
    %47 = arith.subf %44, %46 : vector<16x32xf32>
    %48 = arith.addf %6, %47 : vector<16x32xf32>
    %c2 = arith.constant 2 : index
    %c0_24 = arith.constant 0 : index
    %49 = vector.load %arg1[%c2, %c0_24] : memref<16x64xf32, #tpu.memory_space<vmem>>, vector<1x64xf32>
    %50 = vector.shape_cast %49 : vector<1x64xf32> to vector<64xf32>
    %51 = vector.extract_strided_slice %50 {offsets = [0], sizes = [32], strides = [1]} : vector<64xf32> to vector<32xf32>
    %c3 = arith.constant 3 : index
    %c0_25 = arith.constant 0 : index
    %52 = vector.load %arg1[%c3, %c0_25] : memref<16x64xf32, #tpu.memory_space<vmem>>, vector<1x64xf32>
    %53 = vector.shape_cast %52 : vector<1x64xf32> to vector<64xf32>
    %54 = vector.extract_strided_slice %53 {offsets = [0], sizes = [32], strides = [1]} : vector<64xf32> to vector<32xf32>
    %cst_26 = arith.constant dense<0.000000e+00> : vector<16xf32>
    %55 = vector.multi_reduction <add>, %48, %cst_26 [1] : vector<16x32xf32> to vector<16xf32>
    %56 = vector.shape_cast %55 : vector<16xf32> to vector<16x1xf32>
    %cst_27 = arith.constant 3.200000e+01 : f32
    %57 = vector.broadcast %cst_27 : f32 to vector<16x1xf32>
    %58 = arith.divf %56, %57 : vector<16x1xf32>
    %59 = vector.broadcast %58 : vector<16x1xf32> to vector<16x32xf32>
    %60 = arith.subf %48, %59 : vector<16x32xf32>
    %61 = arith.mulf %60, %60 : vector<16x32xf32>
    %cst_28 = arith.constant dense<0.000000e+00> : vector<16xf32>
    %62 = vector.multi_reduction <add>, %61, %cst_28 [1] : vector<16x32xf32> to vector<16xf32>
    %63 = vector.shape_cast %62 : vector<16xf32> to vector<16x1xf32>
    %cst_29 = arith.constant 3.200000e+01 : f32
    %64 = vector.broadcast %cst_29 : f32 to vector<16x1xf32>
    %65 = arith.divf %63, %64 : vector<16x1xf32>
    %66 = vector.broadcast %58 : vector<16x1xf32> to vector<16x32xf32>
    %67 = arith.subf %48, %66 : vector<16x32xf32>
    %cst_30 = arith.constant 9.99999974E-6 : f32
    %68 = vector.broadcast %cst_30 : f32 to vector<16x1xf32>
    %69 = arith.addf %65, %68 : vector<16x1xf32>
    %70 = math.rsqrt %69 : vector<16x1xf32>
    %71 = vector.broadcast %70 : vector<16x1xf32> to vector<16x32xf32>
    %72 = arith.mulf %67, %71 : vector<16x32xf32>
    %73 = vector.shape_cast %51 : vector<32xf32> to vector<1x32xf32>
    %74 = vector.broadcast %73 : vector<1x32xf32> to vector<16x32xf32>
    %75 = arith.mulf %72, %74 : vector<16x32xf32>
    %76 = vector.shape_cast %54 : vector<32xf32> to vector<1x32xf32>
    %77 = vector.broadcast %76 : vector<1x32xf32> to vector<16x32xf32>
    %78 = arith.addf %75, %77 : vector<16x32xf32>
    %c0_31 = arith.constant 0 : index
    %c0_32 = arith.constant 0 : index
    %c0_33 = arith.constant 0 : index
    %79 = vector.load %arg2[%c0_31, %c0_32, %c0_33] : memref<2x32x64xf32, #tpu.memory_space<vmem>>, vector<1x32x64xf32>
    %80 = vector.shape_cast %79 : vector<1x32x64xf32> to vector<32x64xf32>
    %cst_34 = arith.constant dense<0.000000e+00> : vector<16x64xf32>
    %81 = tpu.matmul %78, %80, %cst_34 {dimension_numbers = #tpu.dot_dimension_numbers<[1], [0], [0], [1], [0, 0, 1, 1], [], []>} : vector<16x32xf32>, vector<32x64xf32>, vector<16x64xf32> -> vector<16x64xf32>
    %c12 = arith.constant 12 : index
    %c0_35 = arith.constant 0 : index
    %82 = vector.load %arg1[%c12, %c0_35] : memref<16x64xf32, #tpu.memory_space<vmem>>, vector<1x64xf32>
    %83 = vector.shape_cast %82 : vector<1x64xf32> to vector<64xf32>
    %84 = vector.shape_cast %83 : vector<64xf32> to vector<1x64xf32>
    %85 = vector.broadcast %84 : vector<1x64xf32> to vector<16x64xf32>
    %86 = arith.addf %81, %85 : vector<16x64xf32>
    %cst_36 = arith.constant 0.000000e+00 : f32
    %87 = vector.broadcast %cst_36 : f32 to vector<16x64xf32>
    %88 = arith.maximumf %86, %87 : vector<16x64xf32>
    %c0_37 = arith.constant 0 : index
    %c0_38 = arith.constant 0 : index
    %c0_39 = arith.constant 0 : index
    %89 = vector.load %arg3[%c0_37, %c0_38, %c0_39] : memref<2x64x32xf32, #tpu.memory_space<vmem>>, vector<1x64x32xf32>
    %90 = vector.shape_cast %89 : vector<1x64x32xf32> to vector<64x32xf32>
    %cst_40 = arith.constant dense<0.000000e+00> : vector<16x32xf32>
    %91 = tpu.matmul %88, %90, %cst_40 {dimension_numbers = #tpu.dot_dimension_numbers<[1], [0], [0], [1], [0, 0, 1, 1], [], []>} : vector<16x64xf32>, vector<64x32xf32>, vector<16x32xf32> -> vector<16x32xf32>
    %92 = arith.addf %48, %91 : vector<16x32xf32>
    %c4 = arith.constant 4 : index
    %c0_41 = arith.constant 0 : index
    %93 = vector.load %arg1[%c4, %c0_41] : memref<16x64xf32, #tpu.memory_space<vmem>>, vector<1x64xf32>
    %94 = vector.shape_cast %93 : vector<1x64xf32> to vector<64xf32>
    %95 = vector.extract_strided_slice %94 {offsets = [0], sizes = [32], strides = [1]} : vector<64xf32> to vector<32xf32>
    %96 = vector.shape_cast %95 : vector<32xf32> to vector<1x32xf32>
    %97 = vector.broadcast %96 : vector<1x32xf32> to vector<16x32xf32>
    %98 = arith.addf %92, %97 : vector<16x32xf32>
    %c5 = arith.constant 5 : index
    %c0_42 = arith.constant 0 : index
    %99 = vector.load %arg1[%c5, %c0_42] : memref<16x64xf32, #tpu.memory_space<vmem>>, vector<1x64xf32>
    %100 = vector.shape_cast %99 : vector<1x64xf32> to vector<64xf32>
    %101 = vector.extract_strided_slice %100 {offsets = [0], sizes = [32], strides = [1]} : vector<64xf32> to vector<32xf32>
    %c6 = arith.constant 6 : index
    %c0_43 = arith.constant 0 : index
    %102 = vector.load %arg1[%c6, %c0_43] : memref<16x64xf32, #tpu.memory_space<vmem>>, vector<1x64xf32>
    %103 = vector.shape_cast %102 : vector<1x64xf32> to vector<64xf32>
    %104 = vector.extract_strided_slice %103 {offsets = [0], sizes = [32], strides = [1]} : vector<64xf32> to vector<32xf32>
    %cst_44 = arith.constant dense<0.000000e+00> : vector<16xf32>
    %105 = vector.multi_reduction <add>, %98, %cst_44 [1] : vector<16x32xf32> to vector<16xf32>
    %106 = vector.shape_cast %105 : vector<16xf32> to vector<16x1xf32>
    %cst_45 = arith.constant 3.200000e+01 : f32
    %107 = vector.broadcast %cst_45 : f32 to vector<16x1xf32>
    %108 = arith.divf %106, %107 : vector<16x1xf32>
    %109 = vector.broadcast %108 : vector<16x1xf32> to vector<16x32xf32>
    %110 = arith.subf %98, %109 : vector<16x32xf32>
    %111 = arith.mulf %110, %110 : vector<16x32xf32>
    %cst_46 = arith.constant dense<0.000000e+00> : vector<16xf32>
    %112 = vector.multi_reduction <add>, %111, %cst_46 [1] : vector<16x32xf32> to vector<16xf32>
    %113 = vector.shape_cast %112 : vector<16xf32> to vector<16x1xf32>
    %cst_47 = arith.constant 3.200000e+01 : f32
    %114 = vector.broadcast %cst_47 : f32 to vector<16x1xf32>
    %115 = arith.divf %113, %114 : vector<16x1xf32>
    %116 = vector.broadcast %108 : vector<16x1xf32> to vector<16x32xf32>
    %117 = arith.subf %98, %116 : vector<16x32xf32>
    %cst_48 = arith.constant 9.99999974E-6 : f32
    %118 = vector.broadcast %cst_48 : f32 to vector<16x1xf32>
    %119 = arith.addf %115, %118 : vector<16x1xf32>
    %120 = math.rsqrt %119 : vector<16x1xf32>
    %121 = vector.broadcast %120 : vector<16x1xf32> to vector<16x32xf32>
    %122 = arith.mulf %117, %121 : vector<16x32xf32>
    %123 = vector.shape_cast %101 : vector<32xf32> to vector<1x32xf32>
    %124 = vector.broadcast %123 : vector<1x32xf32> to vector<16x32xf32>
    %125 = arith.mulf %122, %124 : vector<16x32xf32>
    %126 = vector.shape_cast %104 : vector<32xf32> to vector<1x32xf32>
    %127 = vector.broadcast %126 : vector<1x32xf32> to vector<16x32xf32>
    %128 = arith.addf %125, %127 : vector<16x32xf32>
    %cst_49 = arith.constant dense<0.000000e+00> : vector<32x32xf32>
    %129 = tpu.matmul %7, %128, %cst_49 {dimension_numbers = #tpu.dot_dimension_numbers<[1], [0], [0], [1], [0, 0, 1, 1], [], []>} : vector<32x16xf32>, vector<16x32xf32>, vector<32x32xf32> -> vector<32x32xf32>
    %130 = vector.extract_strided_slice %129 {offsets = [0, 0], sizes = [16, 32], strides = [1, 1]} : vector<32x32xf32> to vector<16x32xf32>
    %cst_50 = arith.constant dense<0.000000e+00> : vector<16x32xf32>
    %131 = tpu.matmul %130, %9, %cst_50 {dimension_numbers = #tpu.dot_dimension_numbers<[1], [0], [0], [1], [0, 0, 1, 1], [], []>} : vector<16x32xf32>, vector<32x32xf32>, vector<16x32xf32> -> vector<16x32xf32>
    %132 = vector.extract_strided_slice %129 {offsets = [16, 0], sizes = [16, 32], strides = [1, 1]} : vector<32x32xf32> to vector<16x32xf32>
    %cst_51 = arith.constant dense<0.000000e+00> : vector<16x32xf32>
    %133 = tpu.matmul %132, %11, %cst_51 {dimension_numbers = #tpu.dot_dimension_numbers<[1], [0], [0], [1], [0, 0, 1, 1], [], []>} : vector<16x32xf32>, vector<32x32xf32>, vector<16x32xf32> -> vector<16x32xf32>
    %134 = arith.subf %131, %133 : vector<16x32xf32>
    %135 = arith.addf %98, %134 : vector<16x32xf32>
    %c7 = arith.constant 7 : index
    %c0_52 = arith.constant 0 : index
    %136 = vector.load %arg1[%c7, %c0_52] : memref<16x64xf32, #tpu.memory_space<vmem>>, vector<1x64xf32>
    %137 = vector.shape_cast %136 : vector<1x64xf32> to vector<64xf32>
    %138 = vector.extract_strided_slice %137 {offsets = [0], sizes = [32], strides = [1]} : vector<64xf32> to vector<32xf32>
    %c8 = arith.constant 8 : index
    %c0_53 = arith.constant 0 : index
    %139 = vector.load %arg1[%c8, %c0_53] : memref<16x64xf32, #tpu.memory_space<vmem>>, vector<1x64xf32>
    %140 = vector.shape_cast %139 : vector<1x64xf32> to vector<64xf32>
    %141 = vector.extract_strided_slice %140 {offsets = [0], sizes = [32], strides = [1]} : vector<64xf32> to vector<32xf32>
    %cst_54 = arith.constant dense<0.000000e+00> : vector<16xf32>
    %142 = vector.multi_reduction <add>, %135, %cst_54 [1] : vector<16x32xf32> to vector<16xf32>
    %143 = vector.shape_cast %142 : vector<16xf32> to vector<16x1xf32>
    %cst_55 = arith.constant 3.200000e+01 : f32
    %144 = vector.broadcast %cst_55 : f32 to vector<16x1xf32>
    %145 = arith.divf %143, %144 : vector<16x1xf32>
    %146 = vector.broadcast %145 : vector<16x1xf32> to vector<16x32xf32>
    %147 = arith.subf %135, %146 : vector<16x32xf32>
    %148 = arith.mulf %147, %147 : vector<16x32xf32>
    %cst_56 = arith.constant dense<0.000000e+00> : vector<16xf32>
    %149 = vector.multi_reduction <add>, %148, %cst_56 [1] : vector<16x32xf32> to vector<16xf32>
    %150 = vector.shape_cast %149 : vector<16xf32> to vector<16x1xf32>
    %cst_57 = arith.constant 3.200000e+01 : f32
    %151 = vector.broadcast %cst_57 : f32 to vector<16x1xf32>
    %152 = arith.divf %150, %151 : vector<16x1xf32>
    %153 = vector.broadcast %145 : vector<16x1xf32> to vector<16x32xf32>
    %154 = arith.subf %135, %153 : vector<16x32xf32>
    %cst_58 = arith.constant 9.99999974E-6 : f32
    %155 = vector.broadcast %cst_58 : f32 to vector<16x1xf32>
    %156 = arith.addf %152, %155 : vector<16x1xf32>
    %157 = math.rsqrt %156 : vector<16x1xf32>
    %158 = vector.broadcast %157 : vector<16x1xf32> to vector<16x32xf32>
    %159 = arith.mulf %154, %158 : vector<16x32xf32>
    %160 = vector.shape_cast %138 : vector<32xf32> to vector<1x32xf32>
    %161 = vector.broadcast %160 : vector<1x32xf32> to vector<16x32xf32>
    %162 = arith.mulf %159, %161 : vector<16x32xf32>
    %163 = vector.shape_cast %141 : vector<32xf32> to vector<1x32xf32>
    %164 = vector.broadcast %163 : vector<1x32xf32> to vector<16x32xf32>
    %165 = arith.addf %162, %164 : vector<16x32xf32>
    %c1_59 = arith.constant 1 : index
    %c0_60 = arith.constant 0 : index
    %c0_61 = arith.constant 0 : index
    %166 = vector.load %arg2[%c1_59, %c0_60, %c0_61] : memref<2x32x64xf32, #tpu.memory_space<vmem>>, vector<1x32x64xf32>
    %167 = vector.shape_cast %166 : vector<1x32x64xf32> to vector<32x64xf32>
    %cst_62 = arith.constant dense<0.000000e+00> : vector<16x64xf32>
    %168 = tpu.matmul %165, %167, %cst_62 {dimension_numbers = #tpu.dot_dimension_numbers<[1], [0], [0], [1], [0, 0, 1, 1], [], []>} : vector<16x32xf32>, vector<32x64xf32>, vector<16x64xf32> -> vector<16x64xf32>
    %c13 = arith.constant 13 : index
    %c0_63 = arith.constant 0 : index
    %169 = vector.load %arg1[%c13, %c0_63] : memref<16x64xf32, #tpu.memory_space<vmem>>, vector<1x64xf32>
    %170 = vector.shape_cast %169 : vector<1x64xf32> to vector<64xf32>
    %171 = vector.shape_cast %170 : vector<64xf32> to vector<1x64xf32>
    %172 = vector.broadcast %171 : vector<1x64xf32> to vector<16x64xf32>
    %173 = arith.addf %168, %172 : vector<16x64xf32>
    %cst_64 = arith.constant 0.000000e+00 : f32
    %174 = vector.broadcast %cst_64 : f32 to vector<16x64xf32>
    %175 = arith.maximumf %173, %174 : vector<16x64xf32>
    %c1_65 = arith.constant 1 : index
    %c0_66 = arith.constant 0 : index
    %c0_67 = arith.constant 0 : index
    %176 = vector.load %arg3[%c1_65, %c0_66, %c0_67] : memref<2x64x32xf32, #tpu.memory_space<vmem>>, vector<1x64x32xf32>
    %177 = vector.shape_cast %176 : vector<1x64x32xf32> to vector<64x32xf32>
    %cst_68 = arith.constant dense<0.000000e+00> : vector<16x32xf32>
    %178 = tpu.matmul %175, %177, %cst_68 {dimension_numbers = #tpu.dot_dimension_numbers<[1], [0], [0], [1], [0, 0, 1, 1], [], []>} : vector<16x64xf32>, vector<64x32xf32>, vector<16x32xf32> -> vector<16x32xf32>
    %179 = arith.addf %135, %178 : vector<16x32xf32>
    %c9 = arith.constant 9 : index
    %c0_69 = arith.constant 0 : index
    %180 = vector.load %arg1[%c9, %c0_69] : memref<16x64xf32, #tpu.memory_space<vmem>>, vector<1x64xf32>
    %181 = vector.shape_cast %180 : vector<1x64xf32> to vector<64xf32>
    %182 = vector.extract_strided_slice %181 {offsets = [0], sizes = [32], strides = [1]} : vector<64xf32> to vector<32xf32>
    %183 = vector.shape_cast %182 : vector<32xf32> to vector<1x32xf32>
    %184 = vector.broadcast %183 : vector<1x32xf32> to vector<16x32xf32>
    %185 = arith.addf %179, %184 : vector<16x32xf32>
    %186 = vector.extract_strided_slice %185 {offsets = [8, 0], sizes = [8, 32], strides = [1, 1]} : vector<16x32xf32> to vector<8x32xf32>
    %c10 = arith.constant 10 : index
    %c0_70 = arith.constant 0 : index
    %187 = vector.load %arg1[%c10, %c0_70] : memref<16x64xf32, #tpu.memory_space<vmem>>, vector<1x64xf32>
    %188 = vector.shape_cast %187 : vector<1x64xf32> to vector<64xf32>
    %189 = vector.extract_strided_slice %188 {offsets = [0], sizes = [32], strides = [1]} : vector<64xf32> to vector<32xf32>
    %c11 = arith.constant 11 : index
    %c0_71 = arith.constant 0 : index
    %190 = vector.load %arg1[%c11, %c0_71] : memref<16x64xf32, #tpu.memory_space<vmem>>, vector<1x64xf32>
    %191 = vector.shape_cast %190 : vector<1x64xf32> to vector<64xf32>
    %192 = vector.extract_strided_slice %191 {offsets = [0], sizes = [32], strides = [1]} : vector<64xf32> to vector<32xf32>
    %cst_72 = arith.constant dense<0.000000e+00> : vector<8xf32>
    %193 = vector.multi_reduction <add>, %186, %cst_72 [1] : vector<8x32xf32> to vector<8xf32>
    %194 = vector.shape_cast %193 : vector<8xf32> to vector<8x1xf32>
    %cst_73 = arith.constant 3.200000e+01 : f32
    %195 = vector.broadcast %cst_73 : f32 to vector<8x1xf32>
    %196 = arith.divf %194, %195 : vector<8x1xf32>
    %197 = vector.broadcast %196 : vector<8x1xf32> to vector<8x32xf32>
    %198 = arith.subf %186, %197 : vector<8x32xf32>
    %199 = arith.mulf %198, %198 : vector<8x32xf32>
    %cst_74 = arith.constant dense<0.000000e+00> : vector<8xf32>
    %200 = vector.multi_reduction <add>, %199, %cst_74 [1] : vector<8x32xf32> to vector<8xf32>
    %201 = vector.shape_cast %200 : vector<8xf32> to vector<8x1xf32>
    %cst_75 = arith.constant 3.200000e+01 : f32
    %202 = vector.broadcast %cst_75 : f32 to vector<8x1xf32>
    %203 = arith.divf %201, %202 : vector<8x1xf32>
    %204 = vector.broadcast %196 : vector<8x1xf32> to vector<8x32xf32>
    %205 = arith.subf %186, %204 : vector<8x32xf32>
    %cst_76 = arith.constant 9.99999974E-6 : f32
    %206 = vector.broadcast %cst_76 : f32 to vector<8x1xf32>
    %207 = arith.addf %203, %206 : vector<8x1xf32>
    %208 = math.rsqrt %207 : vector<8x1xf32>
    %209 = vector.broadcast %208 : vector<8x1xf32> to vector<8x32xf32>
    %210 = arith.mulf %205, %209 : vector<8x32xf32>
    %211 = vector.shape_cast %189 : vector<32xf32> to vector<1x32xf32>
    %212 = vector.broadcast %211 : vector<1x32xf32> to vector<8x32xf32>
    %213 = arith.mulf %210, %212 : vector<8x32xf32>
    %214 = vector.shape_cast %192 : vector<32xf32> to vector<1x32xf32>
    %215 = vector.broadcast %214 : vector<1x32xf32> to vector<8x32xf32>
    %216 = arith.addf %213, %215 : vector<8x32xf32>
    %c0_77 = arith.constant 0 : index
    %c0_78 = arith.constant 0 : index
    %217 = vector.load %arg6[%c0_77, %c0_78] : memref<33x128xf32, #tpu.memory_space<vmem>>, vector<32x128xf32>
    %c32 = arith.constant 32 : index
    %c0_79 = arith.constant 0 : index
    %218 = vector.load %arg6[%c32, %c0_79] : memref<33x128xf32, #tpu.memory_space<vmem>>, vector<1x128xf32>
    %219 = vector.shape_cast %218 : vector<1x128xf32> to vector<128xf32>
    %cst_80 = arith.constant dense<0.000000e+00> : vector<8x128xf32>
    %220 = tpu.matmul %216, %217, %cst_80 {dimension_numbers = #tpu.dot_dimension_numbers<[1], [0], [0], [1], [0, 0, 1, 1], [], []>} : vector<8x32xf32>, vector<32x128xf32>, vector<8x128xf32> -> vector<8x128xf32>
    %221 = vector.shape_cast %219 : vector<128xf32> to vector<1x128xf32>
    %222 = vector.broadcast %221 : vector<1x128xf32> to vector<8x128xf32>
    %223 = arith.addf %220, %222 : vector<8x128xf32>
    %c0_81 = arith.constant 0 : index
    %c0_82 = arith.constant 0 : index
    %224 = vector.load %arg7[%c0_81, %c0_82] : memref<8x128xf32, #tpu.memory_space<vmem>>, vector<8x128xf32>
    tpu.vector_store %arg7[%c0_81, %c0_82], %223 {strides = array<i32>} : memref<8x128xf32, #tpu.memory_space<vmem>>, vector<8x128xf32>,
    return
  }
}

</mosaic_0001>

<llo_original>
// kernel: transformer_classifier_forward.1
$region0: #{transformer_classifier_forward.1}
  #allocation0 [shape = 'u32[]', space=smem, size = 0x4, offset = 0x4, fixed_abs, tag = 'smem constant byte address 0x4 - core index']
  #allocation1 [shape = 'u32[72,128]{1,0:T(1,128)}', space=vmem, size = 0x9000, scoped, tag = 'internal scratch']
  %s0 = inlined_call_operand.vmem [shape: f32[2,16,32], index: 0, kind: input, shape index: {}]
  %s1 = inlined_call_operand.vmem [shape: f32[16,64], index: 1, kind: input, shape index: {}]
  %s2 = inlined_call_operand.vmem [shape: f32[2,32,64], index: 2, kind: input, shape index: {}]
  %s3 = inlined_call_operand.vmem [shape: f32[2,64,32], index: 3, kind: input, shape index: {}]
  %s4 = inlined_call_operand.vmem [shape: f32[32,16], index: 4, kind: input, shape index: {}]
  %s5 = inlined_call_operand.vmem [shape: f32[2,32,32], index: 5, kind: input, shape index: {}]
  %s6 = inlined_call_operand.vmem [shape: f32[33,128], index: 6, kind: input, shape index: {}]
  %s7 = inlined_call_operand.vmem [shape: f32[8,128], index: 7, kind: output, shape index: {}]
  %s8 = sld [smem:[#allocation0]]
  $region38: #{transformer_classifier_forward.1} parent=0
    _
  %s10 = ssub.s32 1, %s8
  %s11 = scalar_select 0, %s10, %s8
  // Predicated region
  $region2: #{transformer_classifier_forward.1} parent=0 // pred_check
    _
  $region3: #{transformer_classifier_forward.1} parent=0 // pred_check_branch
    %13 = sbr.rel (0) target = $region5
  $region4: #{transformer_classifier_forward.1} parent=0 // pred_region
    _
  $region5: #{transformer_classifier_forward.1} parent=0 // pred_fallthru
    _
  // Predicated region
  $region6: #{transformer_classifier_forward.1} parent=0 // pred_check
    _
  $region7: #{transformer_classifier_forward.1} parent=0 // pred_check_branch
    %15 = sbr.rel (0) target = $region9
  $region8: #{transformer_classifier_forward.1} parent=0 // pred_region
    _
  $region9: #{transformer_classifier_forward.1} parent=0 // pred_fallthru
    _
  // Predicated region
  $region10: #{transformer_classifier_forward.1} parent=0 // pred_check
    _
  $region11: #{transformer_classifier_forward.1} parent=0 // pred_check_branch
    %17 = sbr.rel (0) target = $region13
  $region12: #{transformer_classifier_forward.1} parent=0 // pred_region
    _
  $region13: #{transformer_classifier_forward.1} parent=0 // pred_fallthru
    _
  // Predicated region
  $region14: #{transformer_classifier_forward.1} parent=0 // pred_check
    _
  $region15: #{transformer_classifier_forward.1} parent=0 // pred_check_branch
    %19 = sbr.rel (0) target = $region17
  $region16: #{transformer_classifier_forward.1} parent=0 // pred_region
    _
  $region17: #{transformer_classifier_forward.1} parent=0 // pred_fallthru
    _
  // Predicated region
  $region18: #{transformer_classifier_forward.1} parent=0 // pred_check
    _
  $region19: #{transformer_classifier_forward.1} parent=0 // pred_check_branch
    %21 = sbr.rel (0) target = $region21
  $region20: #{transformer_classifier_forward.1} parent=0 // pred_region
    _
  $region21: #{transformer_classifier_forward.1} parent=0 // pred_fallthru
    _
  // Predicated region
  $region22: #{transformer_classifier_forward.1} parent=0 // pred_check
    _
  $region23: #{transformer_classifier_forward.1} parent=0 // pred_check_branch
    %23 = sbr.rel (0) target = $region25
  $region24: #{transformer_classifier_forward.1} parent=0 // pred_region
    _
  $region25: #{transformer_classifier_forward.1} parent=0 // pred_fallthru
    _
  // Predicated region
  $region26: #{transformer_classifier_forward.1} parent=0 // pred_check
    _
  $region27: #{transformer_classifier_forward.1} parent=0 // pred_check_branch
    %25 = sbr.rel (0) target = $region29
  $region28: #{transformer_classifier_forward.1} parent=0 // pred_region
    _
  $region29: #{transformer_classifier_forward.1} parent=0 // pred_fallthru
    _
  %v26 = vld [vmem:[%s0] sm:$0xff]
  %v27 = vld [vmem:[%s0 + $0x8] sm:$0xff]
  %v28 = vmul.f32 %v26, 5.656854
  %v29 = vmul.f32 %v27, 5.656854
  %s30 = scalar_lea.vmem %s0, 16
  %v31 = vld [vmem:[%s30] sm:$0xff]
  %v32 = vld [vmem:[%s30 + $0x8] sm:$0xff]
  %v33 = vadd.f32 %v28, %v31
  %v34 = vadd.f32 %v29, %v32
  %v35 = vld [vmem:[%s4] sm:$0xff]
  %v36 = vld [vmem:[%s4 + $0x8] sm:$0xff]
  %v37 = vld [vmem:[%s4 + $0x10] sm:$0xff]
  %v38 = vld [vmem:[%s4 + $0x18] sm:$0xff]
  %v39 = vld [vmem:[%s5] sm:$0xff]
  %v40 = vld [vmem:[%s5 + $0x8] sm:$0xff]
  %v41 = vld [vmem:[%s5 + $0x10] sm:$0xff]
  %v42 = vld [vmem:[%s5 + $0x18] sm:$0xff]
  %s43 = scalar_lea.vmem %s5, 32
  %v44 = vld [vmem:[%s43] sm:$0xff]
  %v45 = vld [vmem:[%s43 + $0x8] sm:$0xff]
  %v46 = vld [vmem:[%s43 + $0x10] sm:$0xff]
  %v47 = vld [vmem:[%s43 + $0x18] sm:$0xff]
  %v48 = vld [vmem:[%s1] sm:$0x1]
  %v49 = vld [vmem:[%s1 + $0x1] sm:$0x1]
  %vm50 = vcmask 261120
  %v51 = vsel %vm50, %v33, 0.0
  %52 = vadd.xlane.f32.xlu0 %v51
  %v53 = vpop.xlane.xlu0 %52
  %v54 = vsel %vm50, %v34, 0.0
  %55 = vadd.xlane.f32.xlu0 %v54
  %v56 = vpop.xlane.xlu0 %55
  %v57 = vrcp.pop 32.0
  %v58 = vmul.f32 32.0, %v57
  %v59 = vsub.f32 1.0, %v58
  %v60 = vmul.f32 %v57, %v59
  %v61 = vadd.f32 %v57, %v60
  %vm62 = vweird.f32 %v57
  %v63 = vsel %vm62, %v57, %v61
  %v64 = vmul.f32 %v53, %v63
  %v65 = vmul.f32 %v56, %v63
  %v66 = vsub.f32 %v33, %v64
  %v67 = vsub.f32 %v34, %v65
  %v68 = vmul.f32 %v66, %v66
  %v69 = vmul.f32 %v67, %v67
  %v70 = vsel %vm50, %v68, 0.0
  %71 = vadd.xlane.f32.xlu0 %v70
  %v72 = vpop.xlane.xlu0 %71
  %v73 = vsel %vm50, %v69, 0.0
  %74 = vadd.xlane.f32.xlu0 %v73
  %v75 = vpop.xlane.xlu0 %74
  %v76 = vmul.f32 %v72, %v63
  %v77 = vmul.f32 %v75, %v63
  %v78 = vadd.f32 %v76, 1e-05
  %v79 = vadd.f32 %v77, 1e-05
  %v80 = vrsqrt.pop %v78
  %v81 = vmul.f32 %v80, %v78
  %v82 = vmul.f32 %v81, %v80
  %v83 = vmul.f32 0.5, %v82
  %v84 = vsub.f32 1.5, %v83
  %v85 = vmul.f32 %v80, %v84
  %vm86 = vweird.f32 %v78
  %vm87 = vweird.f32 %v80
  %vm88 = vmor %vm86, %vm87
  %v89 = vsel %vm88, %v80, %v85
  %v90 = vrsqrt.pop %v79
  %v91 = vmul.f32 %v90, %v79
  %v92 = vmul.f32 %v91, %v90
  %v93 = vmul.f32 0.5, %v92
  %v94 = vsub.f32 1.5, %v93
  %v95 = vmul.f32 %v90, %v94
  %vm96 = vweird.f32 %v79
  %vm97 = vweird.f32 %v90
  %vm98 = vmor %vm96, %vm97
  %v99 = vsel %vm98, %v90, %v95
  %v100 = vmul.f32 %v66, %v89
  %v101 = vmul.f32 %v67, %v99
  %v102 = vperm.slane %v48, 0
  %v103 = vmul.f32 %v100, %v102
  %v104 = vmul.f32 %v101, %v102
  %v105 = vperm.slane %v49, 0
  %v106 = vadd.f32 %v103, %v105
  %v107 = vadd.f32 %v104, %v105
  %vm108 = vcmask 130048
  %v110 = vsel %vm108, %v35, 0
  %v113 = vsel %vm108, %v36, 0
  %v116 = vsel %vm108, %v37, 0
  %v119 = vsel %vm108, %v38, 0
  %121 = vmatpush.msra.mxu0 0.0
  %122 = vmatpush.msra.mxu0 0.0
  %123 = vmatpush.msra.mxu0 0.0
  %124 = vmatpush.msra.mxu0 0.0
  %125 = vmatpush.msra.mxu0 0.0
  %126 = vmatpush.msra.mxu0 0.0
  %127 = vmatpush.msra.mxu0 0.0
  %128 = vmatpush.msra.mxu0 0.0
  %129 = vmatpush.msra.mxu0 0.0
  %130 = vmatpush.msra.mxu0 0.0
  %131 = vmatpush.msra.mxu0 0.0
  %132 = vmatpush.msra.mxu0 0.0
  %133 = vmatpush.msra.mxu0 0.0
  %134 = vmatpush.msra.mxu0 0.0
  %135 = vmatpush.msra.mxu0 %v107
  %136 = vmatpush.msra.mxu0 %v106
  %137 = vmatmul.f32.gmra.mxu0 %v110
  %v138 = vpop.f32.mrf.mxu0
  %v139 = vadd.f32 0.0, %v138
  %140 = vmatmul.f32.gmra.mxu0 %v113
  %v141 = vpop.f32.mrf.mxu0
  %v142 = vadd.f32 0.0, %v141
  %143 = vmatmul.f32.gmra.mxu0 %v116
  %v144 = vpop.f32.mrf.mxu0
  %v145 = vadd.f32 0.0, %v144
  %146 = vmatmul.f32.gmra.mxu0 %v119
  %v147 = vpop.f32.mrf.mxu0
  %v148 = vadd.f32 0.0, %v147
  %149 = vdwg.mxu0
  %v151 = vsel %vm50, %v139, 0
  %v154 = vsel %vm50, %v142, 0
  %156 = vmatpush.msra.mxu0 0.0
  %157 = vmatpush.msra.mxu0 0.0
  %158 = vmatpush.msra.mxu0 0.0
  %159 = vmatpush.msra.mxu0 0.0
  %160 = vmatpush.msra.mxu0 0.0
  %161 = vmatpush.msra.mxu0 0.0
  %162 = vmatpush.msra.mxu0 0.0
  %163 = vmatpush.msra.mxu0 0.0
  %164 = vmatpush.msra.mxu0 0.0
  %165 = vmatpush.msra.mxu0 0.0
  %166 = vmatpush.msra.mxu0 0.0
  %167 = vmatpush.msra.mxu0 0.0
  %168 = vmatpush.msra.mxu0 %v42
  %169 = vmatpush.msra.mxu0 %v41
  %170 = vmatpush.msra.mxu0 %v40
  %171 = vmatpush.msra.mxu0 %v39
  %172 = vmatmul.f32.gmra.mxu0 %v151
  %v173 = vpop.f32.mrf.mxu0
  %v174 = vadd.f32 0.0, %v173
  %175 = vmatmul.f32.gmra.mxu0 %v154
  %v176 = vpop.f32.mrf.mxu0
  %v177 = vadd.f32 0.0, %v176
  %178 = vdwg.mxu0
  %v180 = vsel %vm50, %v145, 0
  %v183 = vsel %vm50, %v148, 0
  %185 = vmatpush.msra.mxu0 0.0
  %186 = vmatpush.msra.mxu0 0.0
  %187 = vmatpush.msra.mxu0 0.0
  %188 = vmatpush.msra.mxu0 0.0
  %189 = vmatpush.msra.mxu0 0.0
  %190 = vmatpush.msra.mxu0 0.0
  %191 = vmatpush.msra.mxu0 0.0
  %192 = vmatpush.msra.mxu0 0.0
  %193 = vmatpush.msra.mxu0 0.0
  %194 = vmatpush.msra.mxu0 0.0
  %195 = vmatpush.msra.mxu0 0.0
  %196 = vmatpush.msra.mxu0 0.0
  %197 = vmatpush.msra.mxu0 %v47
  %198 = vmatpush.msra.mxu0 %v46
  %199 = vmatpush.msra.mxu0 %v45
  %200 = vmatpush.msra.mxu0 %v44
  %201 = vmatmul.f32.gmra.mxu0 %v180
  %v202 = vpop.f32.mrf.mxu0
  %v203 = vadd.f32 0.0, %v202
  %204 = vmatmul.f32.gmra.mxu0 %v183
  %v205 = vpop.f32.mrf.mxu0
  %v206 = vadd.f32 0.0, %v205
  %207 = vdwg.mxu0
  %v208 = vsub.f32 %v174, %v203
  %v209 = vsub.f32 %v177, %v206
  %v210 = vadd.f32 %v33, %v208
  %v211 = vadd.f32 %v34, %v209
  %v212 = vld [vmem:[%s1 + $0x2] sm:$0x1]
  %v213 = vld [vmem:[%s1 + $0x3] sm:$0x1]
  %v214 = vsel %vm50, %v210, 0.0
  %215 = vadd.xlane.f32.xlu0 %v214
  %v216 = vpop.xlane.xlu0 %215
  %v217 = vsel %vm50, %v211, 0.0
  %218 = vadd.xlane.f32.xlu0 %v217
  %v219 = vpop.xlane.xlu0 %218
  %v220 = vmul.f32 %v216, %v63
  %v221 = vmul.f32 %v219, %v63
  %v222 = vsub.f32 %v210, %v220
  %v223 = vsub.f32 %v211, %v221
  %v224 = vmul.f32 %v222, %v222
  %v225 = vmul.f32 %v223, %v223
  %v226 = vsel %vm50, %v224, 0.0
  %227 = vadd.xlane.f32.xlu0 %v226
  %v228 = vpop.xlane.xlu0 %227
  %v229 = vsel %vm50, %v225, 0.0
  %230 = vadd.xlane.f32.xlu0 %v229
  %v231 = vpop.xlane.xlu0 %230
  %v232 = vmul.f32 %v228, %v63
  %v233 = vmul.f32 %v231, %v63
  %v234 = vadd.f32 %v232, 1e-05
  %v235 = vadd.f32 %v233, 1e-05
  %v236 = vrsqrt.pop %v234
  %v237 = vmul.f32 %v236, %v234
  %v238 = vmul.f32 %v237, %v236
  %v239 = vmul.f32 0.5, %v238
  %v240 = vsub.f32 1.5, %v239
  %v241 = vmul.f32 %v236, %v240
  %vm242 = vweird.f32 %v234
  %vm243 = vweird.f32 %v236
  %vm244 = vmor %vm242, %vm243
  %v245 = vsel %vm244, %v236, %v241
  %v246 = vrsqrt.pop %v235
  %v247 = vmul.f32 %v246, %v235
  %v248 = vmul.f32 %v247, %v246
  %v249 = vmul.f32 0.5, %v248
  %v250 = vsub.f32 1.5, %v249
  %v251 = vmul.f32 %v246, %v250
  %vm252 = vweird.f32 %v235
  %vm253 = vweird.f32 %v246
  %vm254 = vmor %vm252, %vm253
  %v255 = vsel %vm254, %v246, %v251
  %v256 = vmul.f32 %v222, %v245
  %v257 = vmul.f32 %v223, %v255
  %v258 = vperm.slane %v212, 0
  %v259 = vmul.f32 %v256, %v258
  %v260 = vmul.f32 %v257, %v258
  %v261 = vperm.slane %v213, 0
  %v262 = vadd.f32 %v259, %v261
  %v263 = vadd.f32 %v260, %v261
  %v264 = vld [vmem:[%s2] sm:$0xff]
  %v265 = vld [vmem:[%s2 + $0x8] sm:$0xff]
  %v266 = vld [vmem:[%s2 + $0x10] sm:$0xff]
  %v267 = vld [vmem:[%s2 + $0x18] sm:$0xff]
  %v268 = vld [vmem:[%s1 + $0xc] sm:$0x1]
  %v269 = vperm.slane %v268, 0
  %v271 = vsel %vm50, %v262, 0
  %v274 = vsel %vm50, %v263, 0
  %276 = vmatpush.msra.mxu0 0.0
  %277 = vmatpush.msra.mxu0 0.0
  %278 = vmatpush.msra.mxu0 0.0
  %279 = vmatpush.msra.mxu0 0.0
  %280 = vmatpush.msra.mxu0 0.0
  %281 = vmatpush.msra.mxu0 0.0
  %282 = vmatpush.msra.mxu0 0.0
  %283 = vmatpush.msra.mxu0 0.0
  %284 = vmatpush.msra.mxu0 0.0
  %285 = vmatpush.msra.mxu0 0.0
  %286 = vmatpush.msra.mxu0 0.0
  %287 = vmatpush.msra.mxu0 0.0
  %288 = vmatpush.msra.mxu0 %v267
  %289 = vmatpush.msra.mxu0 %v266
  %290 = vmatpush.msra.mxu0 %v265
  %291 = vmatpush.msra.mxu0 %v264
  %292 = vmatmul.f32.gmra.mxu0 %v271
  %v293 = vpop.f32.mrf.mxu0
  %v294 = vadd.f32 %v269, %v293
  %295 = vmatmul.f32.gmra.mxu0 %v274
  %v296 = vpop.f32.mrf.mxu0
  %v297 = vadd.f32 %v269, %v296
  %298 = vdwg.mxu0
  %v299 = vmax.f32 %v294, 0.0
  %v300 = vmax.f32 %v297, 0.0
  %v301 = vld [vmem:[%s3] sm:$0xff]
  %v302 = vld [vmem:[%s3 + $0x8] sm:$0xff]
  %v303 = vld [vmem:[%s3 + $0x10] sm:$0xff]
  %v304 = vld [vmem:[%s3 + $0x18] sm:$0xff]
  %v305 = vld [vmem:[%s3 + $0x20] sm:$0xff]
  %v306 = vld [vmem:[%s3 + $0x28] sm:$0xff]
  %v307 = vld [vmem:[%s3 + $0x30] sm:$0xff]
  %v308 = vld [vmem:[%s3 + $0x38] sm:$0xff]
  %vm309 = vcmask 523264
  %v311 = vsel %vm309, %v299, 0
  %v314 = vsel %vm309, %v300, 0
  %316 = vmatpush.msra.mxu0 0.0
  %317 = vmatpush.msra.mxu0 0.0
  %318 = vmatpush.msra.mxu0 0.0
  %319 = vmatpush.msra.mxu0 0.0
  %320 = vmatpush.msra.mxu0 0.0
  %321 = vmatpush.msra.mxu0 0.0
  %322 = vmatpush.msra.mxu0 0.0
  %323 = vmatpush.msra.mxu0 0.0
  %324 = vmatpush.msra.mxu0 %v308
  %325 = vmatpush.msra.mxu0 %v307
  %326 = vmatpush.msra.mxu0 %v306
  %327 = vmatpush.msra.mxu0 %v305
  %328 = vmatpush.msra.mxu0 %v304
  %329 = vmatpush.msra.mxu0 %v303
  %330 = vmatpush.msra.mxu0 %v302
  %331 = vmatpush.msra.mxu0 %v301
  %332 = vmatmul.f32.gmra.mxu0 %v311
  %v333 = vpop.f32.mrf.mxu0
  %v334 = vadd.f32 0.0, %v333
  %335 = vmatmul.f32.gmra.mxu0 %v314
  %v336 = vpop.f32.mrf.mxu0
  %v337 = vadd.f32 0.0, %v336
  %338 = vdwg.mxu0
  %v339 = vadd.f32 %v210, %v334
  %v340 = vadd.f32 %v211, %v337
  %v341 = vld [vmem:[%s1 + $0x4] sm:$0x1]
  %v342 = vperm.slane %v341, 0
  %v343 = vadd.f32 %v339, %v342
  %v344 = vadd.f32 %v340, %v342
  %v345 = vld [vmem:[%s1 + $0x5] sm:$0x1]
  %v346 = vld [vmem:[%s1 + $0x6] sm:$0x1]
  %v347 = vsel %vm50, %v343, 0.0
  %348 = vadd.xlane.f32.xlu0 %v347
  %v349 = vpop.xlane.xlu0 %348
  %v350 = vsel %vm50, %v344, 0.0
  %351 = vadd.xlane.f32.xlu0 %v350
  %v352 = vpop.xlane.xlu0 %351
  %v353 = vmul.f32 %v349, %v63
  %v354 = vmul.f32 %v352, %v63
  %v355 = vsub.f32 %v343, %v353
  %v356 = vsub.f32 %v344, %v354
  %v357 = vmul.f32 %v355, %v355
  %v358 = vmul.f32 %v356, %v356
  %v359 = vsel %vm50, %v357, 0.0
  %360 = vadd.xlane.f32.xlu0 %v359
  %v361 = vpop.xlane.xlu0 %360
  %v362 = vsel %vm50, %v358, 0.0
  %363 = vadd.xlane.f32.xlu0 %v362
  %v364 = vpop.xlane.xlu0 %363
  %v365 = vmul.f32 %v361, %v63
  %v366 = vmul.f32 %v364, %v63
  %v367 = vadd.f32 %v365, 1e-05
  %v368 = vadd.f32 %v366, 1e-05
  %v369 = vrsqrt.pop %v367
  %v370 = vmul.f32 %v369, %v367
  %v371 = vmul.f32 %v370, %v369
  %v372 = vmul.f32 0.5, %v371
  %v373 = vsub.f32 1.5, %v372
  %v374 = vmul.f32 %v369, %v373
  %vm375 = vweird.f32 %v367
  %vm376 = vweird.f32 %v369
  %vm377 = vmor %vm375, %vm376
  %v378 = vsel %vm377, %v369, %v374
  %v379 = vrsqrt.pop %v368
  %v380 = vmul.f32 %v379, %v368
  %v381 = vmul.f32 %v380, %v379
  %v382 = vmul.f32 0.5, %v381
  %v383 = vsub.f32 1.5, %v382
  %v384 = vmul.f32 %v379, %v383
  %vm385 = vweird.f32 %v368
  %vm386 = vweird.f32 %v379
  %vm387 = vmor %vm385, %vm386
  %v388 = vsel %vm387, %v379, %v384
  %v389 = vmul.f32 %v355, %v378
  %v390 = vmul.f32 %v356, %v388
  %v391 = vperm.slane %v345, 0
  %v392 = vmul.f32 %v389, %v391
  %v393 = vmul.f32 %v390, %v391
  %v394 = vperm.slane %v346, 0
  %v395 = vadd.f32 %v392, %v394
  %v396 = vadd.f32 %v393, %v394
  %397 = vmatpush.msra.mxu0 0.0
  %398 = vmatpush.msra.mxu0 0.0
  %399 = vmatpush.msra.mxu0 0.0
  %400 = vmatpush.msra.mxu0 0.0
  %401 = vmatpush.msra.mxu0 0.0
  %402 = vmatpush.msra.mxu0 0.0
  %403 = vmatpush.msra.mxu0 0.0
  %404 = vmatpush.msra.mxu0 0.0
  %405 = vmatpush.msra.mxu0 0.0
  %406 = vmatpush.msra.mxu0 0.0
  %407 = vmatpush.msra.mxu0 0.0
  %408 = vmatpush.msra.mxu0 0.0
  %409 = vmatpush.msra.mxu0 0.0
  %410 = vmatpush.msra.mxu0 0.0
  %411 = vmatpush.msra.mxu0 %v396
  %412 = vmatpush.msra.mxu0 %v395
  %413 = vmatmul.f32.gmra.mxu0 %v110
  %v414 = vpop.f32.mrf.mxu0
  %v415 = vadd.f32 0.0, %v414
  %416 = vmatmul.f32.gmra.mxu0 %v113
  %v417 = vpop.f32.mrf.mxu0
  %v418 = vadd.f32 0.0, %v417
  %419 = vmatmul.f32.gmra.mxu0 %v116
  %v420 = vpop.f32.mrf.mxu0
  %v421 = vadd.f32 0.0, %v420
  %422 = vmatmul.f32.gmra.mxu0 %v119
  %v423 = vpop.f32.mrf.mxu0
  %v424 = vadd.f32 0.0, %v423
  %425 = vdwg.mxu0
  %v427 = vsel %vm50, %v415, 0
  %v430 = vsel %vm50, %v418, 0
  %432 = vmatpush.msra.mxu0 0.0
  %433 = vmatpush.msra.mxu0 0.0
  %434 = vmatpush.msra.mxu0 0.0
  %435 = vmatpush.msra.mxu0 0.0
  %436 = vmatpush.msra.mxu0 0.0
  %437 = vmatpush.msra.mxu0 0.0
  %438 = vmatpush.msra.mxu0 0.0
  %439 = vmatpush.msra.mxu0 0.0
  %440 = vmatpush.msra.mxu0 0.0
  %441 = vmatpush.msra.mxu0 0.0
  %442 = vmatpush.msra.mxu0 0.0
  %443 = vmatpush.msra.mxu0 0.0
  %444 = vmatpush.msra.mxu0 %v42
  %445 = vmatpush.msra.mxu0 %v41
  %446 = vmatpush.msra.mxu0 %v40
  %447 = vmatpush.msra.mxu0 %v39
  %448 = vmatmul.f32.gmra.mxu0 %v427
  %v449 = vpop.f32.mrf.mxu0
  %v450 = vadd.f32 0.0, %v449
  %451 = vmatmul.f32.gmra.mxu0 %v430
  %v452 = vpop.f32.mrf.mxu0
  %v453 = vadd.f32 0.0, %v452
  %454 = vdwg.mxu0
  %v456 = vsel %vm50, %v421, 0
  %v459 = vsel %vm50, %v424, 0
  %461 = vmatpush.msra.mxu0 0.0
  %462 = vmatpush.msra.mxu0 0.0
  %463 = vmatpush.msra.mxu0 0.0
  %464 = vmatpush.msra.mxu0 0.0
  %465 = vmatpush.msra.mxu0 0.0
  %466 = vmatpush.msra.mxu0 0.0
  %467 = vmatpush.msra.mxu0 0.0
  %468 = vmatpush.msra.mxu0 0.0
  %469 = vmatpush.msra.mxu0 0.0
  %470 = vmatpush.msra.mxu0 0.0
  %471 = vmatpush.msra.mxu0 0.0
  %472 = vmatpush.msra.mxu0 0.0
  %473 = vmatpush.msra.mxu0 %v47
  %474 = vmatpush.msra.mxu0 %v46
  %475 = vmatpush.msra.mxu0 %v45
  %476 = vmatpush.msra.mxu0 %v44
  %477 = vmatmul.f32.gmra.mxu0 %v456
  %v478 = vpop.f32.mrf.mxu0
  %v479 = vadd.f32 0.0, %v478
  %480 = vmatmul.f32.gmra.mxu0 %v459
  %v481 = vpop.f32.mrf.mxu0
  %v482 = vadd.f32 0.0, %v481
  %483 = vdwg.mxu0
  %v484 = vsub.f32 %v450, %v479
  %v485 = vsub.f32 %v453, %v482
  %v486 = vadd.f32 %v343, %v484
  %v487 = vadd.f32 %v344, %v485
  %v488 = vld [vmem:[%s1 + $0x7] sm:$0x1]
  %v489 = vld [vmem:[%s1 + $0x8] sm:$0x1]
  %v490 = vsel %vm50, %v486, 0.0
  %491 = vadd.xlane.f32.xlu0 %v490
  %v492 = vpop.xlane.xlu0 %491
  %v493 = vsel %vm50, %v487, 0.0
  %494 = vadd.xlane.f32.xlu0 %v493
  %v495 = vpop.xlane.xlu0 %494
  %v496 = vmul.f32 %v492, %v63
  %v497 = vmul.f32 %v495, %v63
  %v498 = vsub.f32 %v486, %v496
  %v499 = vsub.f32 %v487, %v497
  %v500 = vmul.f32 %v498, %v498
  %v501 = vmul.f32 %v499, %v499
  %v502 = vsel %vm50, %v500, 0.0
  %503 = vadd.xlane.f32.xlu0 %v502
  %v504 = vpop.xlane.xlu0 %503
  %v505 = vsel %vm50, %v501, 0.0
  %506 = vadd.xlane.f32.xlu0 %v505
  %v507 = vpop.xlane.xlu0 %506
  %v508 = vmul.f32 %v504, %v63
  %v509 = vmul.f32 %v507, %v63
  %v510 = vadd.f32 %v508, 1e-05
  %v511 = vadd.f32 %v509, 1e-05
  %v512 = vrsqrt.pop %v510
  %v513 = vmul.f32 %v512, %v510
  %v514 = vmul.f32 %v513, %v512
  %v515 = vmul.f32 0.5, %v514
  %v516 = vsub.f32 1.5, %v515
  %v517 = vmul.f32 %v512, %v516
  %vm518 = vweird.f32 %v510
  %vm519 = vweird.f32 %v512
  %vm520 = vmor %vm518, %vm519
  %v521 = vsel %vm520, %v512, %v517
  %v522 = vrsqrt.pop %v511
  %v523 = vmul.f32 %v522, %v511
  %v524 = vmul.f32 %v523, %v522
  %v525 = vmul.f32 0.5, %v524
  %v526 = vsub.f32 1.5, %v525
  %v527 = vmul.f32 %v522, %v526
  %vm528 = vweird.f32 %v511
  %vm529 = vweird.f32 %v522
  %vm530 = vmor %vm528, %vm529
  %v531 = vsel %vm530, %v522, %v527
  %v532 = vmul.f32 %v498, %v521
  %v533 = vmul.f32 %v499, %v531
  %v534 = vperm.slane %v488, 0
  %v535 = vmul.f32 %v532, %v534
  %v536 = vmul.f32 %v533, %v534
  %v537 = vperm.slane %v489, 0
  %v538 = vadd.f32 %v535, %v537
  %v539 = vadd.f32 %v536, %v537
  %s540 = scalar_lea.vmem %s2, 32
  %v541 = vld [vmem:[%s540] sm:$0xff]
  %v542 = vld [vmem:[%s540 + $0x8] sm:$0xff]
  %v543 = vld [vmem:[%s540 + $0x10] sm:$0xff]
  %v544 = vld [vmem:[%s540 + $0x18] sm:$0xff]
  %v545 = vld [vmem:[%s1 + $0xd] sm:$0x1]
  %v546 = vperm.slane %v545, 0
  %v548 = vsel %vm50, %v538, 0
  %v551 = vsel %vm50, %v539, 0
  %553 = vmatpush.msra.mxu0 0.0
  %554 = vmatpush.msra.mxu0 0.0
  %555 = vmatpush.msra.mxu0 0.0
  %556 = vmatpush.msra.mxu0 0.0
  %557 = vmatpush.msra.mxu0 0.0
  %558 = vmatpush.msra.mxu0 0.0
  %559 = vmatpush.msra.mxu0 0.0
  %560 = vmatpush.msra.mxu0 0.0
  %561 = vmatpush.msra.mxu0 0.0
  %562 = vmatpush.msra.mxu0 0.0
  %563 = vmatpush.msra.mxu0 0.0
  %564 = vmatpush.msra.mxu0 0.0
  %565 = vmatpush.msra.mxu0 %v544
  %566 = vmatpush.msra.mxu0 %v543
  %567 = vmatpush.msra.mxu0 %v542
  %568 = vmatpush.msra.mxu0 %v541
  %569 = vmatmul.f32.gmra.mxu0 %v548
  %v570 = vpop.f32.mrf.mxu0
  %v571 = vadd.f32 %v546, %v570
  %572 = vmatmul.f32.gmra.mxu0 %v551
  %v573 = vpop.f32.mrf.mxu0
  %v574 = vadd.f32 %v546, %v573
  %575 = vdwg.mxu0
  %v576 = vmax.f32 %v571, 0.0
  %v577 = vmax.f32 %v574, 0.0
  %s578 = scalar_lea.vmem %s3, 64
  %v579 = vld [vmem:[%s578] sm:$0xff]
  %v580 = vld [vmem:[%s578 + $0x8] sm:$0xff]
  %v581 = vld [vmem:[%s578 + $0x10] sm:$0xff]
  %v582 = vld [vmem:[%s578 + $0x18] sm:$0xff]
  %v583 = vld [vmem:[%s578 + $0x20] sm:$0xff]
  %v584 = vld [vmem:[%s578 + $0x28] sm:$0xff]
  %v585 = vld [vmem:[%s578 + $0x30] sm:$0xff]
  %v586 = vld [vmem:[%s578 + $0x38] sm:$0xff]
  %v588 = vsel %vm309, %v576, 0
  %v591 = vsel %vm309, %v577, 0
  %593 = vmatpush.msra.mxu0 0.0
  %594 = vmatpush.msra.mxu0 0.0
  %595 = vmatpush.msra.mxu0 0.0
  %596 = vmatpush.msra.mxu0 0.0
  %597 = vmatpush.msra.mxu0 0.0
  %598 = vmatpush.msra.mxu0 0.0
  %599 = vmatpush.msra.mxu0 0.0
  %600 = vmatpush.msra.mxu0 0.0
  %601 = vmatpush.msra.mxu0 %v586
  %602 = vmatpush.msra.mxu0 %v585
  %603 = vmatpush.msra.mxu0 %v584
  %604 = vmatpush.msra.mxu0 %v583
  %605 = vmatpush.msra.mxu0 %v582
  %606 = vmatpush.msra.mxu0 %v581
  %607 = vmatpush.msra.mxu0 %v580
  %608 = vmatpush.msra.mxu0 %v579
  %609 = vmatmul.f32.gmra.mxu0 %v588
  %v610 = vpop.f32.mrf.mxu0
  %611 = vmatmul.f32.gmra.mxu0 %v591
  %v612 = vpop.f32.mrf.mxu0
  %v613 = vadd.f32 0.0, %v612
  %614 = vdwg.mxu0
  %v615 = vadd.f32 %v487, %v613
  %v616 = vld [vmem:[%s1 + $0x9] sm:$0x1]
  %v617 = vperm.slane %v616, 0
  %v618 = vadd.f32 %v615, %v617
  %v619 = vld [vmem:[%s1 + $0xa] sm:$0x1]
  %v620 = vld [vmem:[%s1 + $0xb] sm:$0x1]
  %v621 = vsel %vm50, %v618, 0.0
  %622 = vadd.xlane.f32.xlu0 %v621
  %v623 = vpop.xlane.xlu0 %622
  %v624 = vmul.f32 %v623, %v63
  %v625 = vsub.f32 %v618, %v624
  %v626 = vmul.f32 %v625, %v625
  %v627 = vsel %vm50, %v626, 0.0
  %628 = vadd.xlane.f32.xlu0 %v627
  %v629 = vpop.xlane.xlu0 %628
  %v630 = vmul.f32 %v629, %v63
  %v631 = vadd.f32 %v630, 1e-05
  %v632 = vrsqrt.pop %v631
  %v633 = vmul.f32 %v632, %v631
  %v634 = vmul.f32 %v633, %v632
  %v635 = vmul.f32 0.5, %v634
  %v636 = vsub.f32 1.5, %v635
  %v637 = vmul.f32 %v632, %v636
  %vm638 = vweird.f32 %v631
  %vm639 = vweird.f32 %v632
  %vm640 = vmor %vm638, %vm639
  %v641 = vsel %vm640, %v632, %v637
  %v642 = vmul.f32 %v625, %v641
  %v643 = vperm.slane %v619, 0
  %v644 = vmul.f32 %v642, %v643
  %v645 = vperm.slane %v620, 0
  %v646 = vadd.f32 %v644, %v645
  %v647 = vld [vmem:[%s6] sm:$0xff]
  %v648 = vld [vmem:[%s6 + $0x8] sm:$0xff]
  %v649 = vld [vmem:[%s6 + $0x10] sm:$0xff]
  %v650 = vld [vmem:[%s6 + $0x18] sm:$0xff]
  %v651 = vld [vmem:[%s6 + $0x20] sm:$0x1]
  %v652 = vperm.slane %v651, 0
  %v654 = vsel %vm50, %v646, 0
  %656 = vmatpush.msra.mxu0 0.0
  %657 = vmatpush.msra.mxu0 0.0
  %658 = vmatpush.msra.mxu0 0.0
  %659 = vmatpush.msra.mxu0 0.0
  %660 = vmatpush.msra.mxu0 0.0
  %661 = vmatpush.msra.mxu0 0.0
  %662 = vmatpush.msra.mxu0 0.0
  %663 = vmatpush.msra.mxu0 0.0
  %664 = vmatpush.msra.mxu0 0.0
  %665 = vmatpush.msra.mxu0 0.0
  %666 = vmatpush.msra.mxu0 0.0
  %667 = vmatpush.msra.mxu0 0.0
  %668 = vmatpush.msra.mxu0 %v650
  %669 = vmatpush.msra.mxu0 %v649
  %670 = vmatpush.msra.mxu0 %v648
  %671 = vmatpush.msra.mxu0 %v647
  %672 = vmatmul.f32.gmra.mxu0 %v654
  %v673 = vpop.f32.mrf.mxu0
  %v674 = vadd.f32 %v652, %v673
  %675 = vdwg.mxu0
  %676 = vst [vmem:[%s7] sm:$0xff] %v674
  // Predicated region
  $region30: #{transformer_classifier_forward.1} parent=0 // pred_check
    _
  $region31: #{transformer_classifier_forward.1} parent=0 // pred_check_branch
    %678 = sbr.rel (0) target = $region33
  $region32: #{transformer_classifier_forward.1} parent=0 // pred_region
    _
  $region33: #{transformer_classifier_forward.1} parent=0 // pred_fallthru
    _
  // Predicated region
  $region34: #{transformer_classifier_forward.1} parent=0 // pred_check
    _
  $region35: #{transformer_classifier_forward.1} parent=0 // pred_check_branch
    %680 = sbr.rel (0) target = $region37
  $region36: #{transformer_classifier_forward.1} parent=0 // pred_region
    _
  $region37: #{transformer_classifier_forward.1} parent=0 // pred_fallthru
    _

</llo_original>
